<compile_context>
chip_gen: v7x
topology: tpu7x:2x2x1
jax: 0.10.0
libtpu: 0.0.40
codegen_flags: <defaults>
</compile_context>

<pallas_src>
import functools

import jax
import jax.numpy as jnp
from jax.experimental import pallas as pl
from jax.experimental.pallas import tpu as pltpu


def _round_up(x, m):
    return ((x + m - 1) // m) * m


def _largest_tile(total, target, align):
    """Largest multiple of `align` that divides `total` and is <= target."""
    best = align
    t = align
    limit = min(target, total)
    while t <= limit:
        if total % t == 0:
            best = t
        t += align
    return best


def _block_spec(shape, index_map, buffer_count=None):
    """BlockSpec with optional multi-buffering, tolerant of older jax."""
    if buffer_count is not None and hasattr(pl, "Buffered"):
        try:
            return pl.BlockSpec(shape, index_map,
                                pipeline_mode=pl.Buffered(buffer_count))
        except TypeError:
            pass
    return pl.BlockSpec(shape, index_map)


def _w2v_kernel(x_ref, w_t_ref, b_ref, out_ref):
    # x_ref   : (TM, D)  bf16 gathered embedding rows for this token tile
    # w_t_ref : (D, TV)  bf16 transposed linear-weight tile
    # b_ref   : (1, TV)  f32 bias tile
    # out_ref : (TM, TV) logits tile (f32 by default)
    acc = jnp.dot(x_ref[...], w_t_ref[...],
                  preferred_element_type=jnp.float32)        # MXU, f32 accumulate
    out_ref[...] = (acc + b_ref[...]).astype(out_ref.dtype)  # f32 bias add on VPU


def prepare_word2vec_params(emb_table, lin_weight, lin_bias,
                            operand_dtype=jnp.bfloat16):
    """One-time parameter prep (outside the hot path): cast + pre-transpose."""
    V, D = emb_table.shape
    assert lin_weight.shape == (V, D)
    assert lin_bias.shape == (V,)
    emb = jnp.asarray(emb_table).astype(operand_dtype)            # (V, D)
    w_t = jnp.asarray(lin_weight).T.astype(operand_dtype)         # (D, V)
    bias = jnp.asarray(lin_bias).astype(jnp.float32).reshape(1, V)
    return emb, w_t, bias


@functools.partial(jax.jit,
                   static_argnames=("tm_target", "tv_target", "out_dtype"))
def word2vec_forward(inputs, emb, w_t, bias, *,
                     tm_target=512, tv_target=2048, out_dtype=jnp.float32):
    """inputs: int indices of any shape; returns inputs.shape + (V,) logits."""
    V, D = emb.shape
    assert w_t.shape == (D, V)
    assert bias.shape == (1, V)

    x_item = jnp.dtype(emb.dtype).itemsize
    w_item = jnp.dtype(w_t.dtype).itemsize
    o_item = jnp.dtype(out_dtype).itemsize

    # Bounds-safe flat indices (data-dependent gather must never go OOB).
    idx = jnp.clip(inputs.reshape(-1).astype(jnp.int32), 0, V - 1)
    N = idx.shape[0]

    # ---- Tile selection -----------------------------------------------------
    # Vocab tile: lane-aligned and exactly dividing round_up(V, 128) so the
    # post-kernel vocab slice is a no-op whenever V % 128 == 0.
    v_pad = _round_up(V, 128)
    tv = _largest_tile(v_pad, tv_target, 128)

    # Token tile: keep 128/256-multiples once N is large (MXU row occupancy),
    # sublane-aligned otherwise.
    if N >= tm_target:
        tm = tm_target
    elif N >= 128:
        tm = _round_up(N, 128)
    else:
        tm = _round_up(N, 8)

    # Generation-safe VMEM budget (v7x: 64 MiB physical / 32 MiB scoped).
    def working_set(tm_, tv_):
        return (2 * tm_ * D * x_item          # x double-buffer
                + 3 * D * tv_ * w_item        # weight up to triple-buffer
                + 3 * tv_ * 4                 # bias
                + 2 * tm_ * tv_ * o_item)     # output double-buffer
    VMEM_BUDGET = 48 << 20
    while working_set(tm, tv) > VMEM_BUDGET and tv > 128:
        tv = _largest_tile(v_pad, tv // 2, 128)
    while working_set(tm, tv) > VMEM_BUDGET and tm > 8:
        tm = max(8, _round_up(tm // 2, 8))

    n_pad = _round_up(N, tm)
    n_blocks = n_pad // tm
    v_blocks = v_pad // tv

    # ---- Operand prep -------------------------------------------------------
    # Dense embedding gather in the wrapper -> (N, D) operand-dtype slab.
    x = jnp.take(emb, idx, axis=0)
    if n_pad != N:
        x = jnp.pad(x, ((0, n_pad - N), (0, 0)))

    w_t_p, b_p = w_t, bias
    if v_pad != V:
        w_t_p = jnp.pad(w_t, ((0, 0), (0, v_pad - V)))
        b_p = jnp.pad(bias, ((0, 0), (0, v_pad - V)))

    # ---- Adaptive grid order ------------------------------------------------
    # Re-read HBM traffic (excluding the output write):
    #   vocab-outer : x slab re-read v_blocks times -> N*D*x_item*v_blocks
    #   token-outer : weight re-read n_blocks times -> V*D*w_item*n_blocks
    vocab_outer = (n_pad * (v_blocks - 1)) <= (v_pad * (n_blocks - 1))

    # Deeper buffering for the resident operand only when it actually changes
    # at outer-axis boundaries that are crossed more than once.
    buf = 3 if (v_blocks >= 2 and n_blocks >= 2) else None

    if vocab_outer:
        grid = (v_blocks, n_blocks)
        x_spec = _block_spec((tm, D), lambda j, i: (i, 0))
        w_spec = _block_spec((D, tv), lambda j, i: (0, j), buf)
        b_spec = _block_spec((1, tv), lambda j, i: (0, j), buf)
        o_spec = pl.BlockSpec((tm, tv), lambda j, i: (i, j))
        x_reads, w_reads = v_blocks, 1
    else:
        grid = (n_blocks, v_blocks)
        x_spec = _block_spec((tm, D), lambda i, j: (i, 0), buf)
        w_spec = _block_spec((D, tv), lambda i, j: (0, j))
        b_spec = _block_spec((1, tv), lambda i, j: (0, j))
        o_spec = pl.BlockSpec((tm, tv), lambda i, j: (i, j))
        x_reads, w_reads = 1, n_blocks

    cost = pl.CostEstimate(
        flops=2 * n_pad * D * v_pad + n_pad * v_pad,
        transcendentals=0,
        bytes_accessed=(n_pad * D * x_item * x_reads
                        + v_pad * D * w_item * w_reads
                        + v_pad * 4
                        + n_pad * v_pad * o_item),
    )

    vmem_limit = min(max(working_set(tm, tv) + (4 << 20), 32 << 20), 64 << 20)

    out = pl.pallas_call(
        _w2v_kernel,
        out_shape=jax.ShapeDtypeStruct((n_pad, v_pad), out_dtype),
        grid_spec=pltpu.PrefetchScalarGridSpec(
            num_scalar_prefetch=0,
            grid=grid,
            in_specs=[x_spec, w_spec, b_spec],
            out_specs=o_spec,
        ),
        compiler_params=pltpu.CompilerParams(
            dimension_semantics=("parallel", "parallel"),
            vmem_limit_bytes=vmem_limit,
        ),
        cost_estimate=cost,
    )(x, w_t_p, b_p)

    # Slice only when padding actually happened (otherwise a pure no-op view),
    # avoiding an extra full-logits copy in the common aligned case.
    if n_pad != N or v_pad != V:
        out = out[:N, :V]
    return out.reshape(inputs.shape + (V,))


if __name__ == "__main__":
    VOCAB = 256
    EMBED_DIM = 128
    BATCH, SEQ = 2, 8

    key = jax.random.PRNGKey(0)
    k_emb, k_w, k_b, k_idx = jax.random.split(key, 4)

    # Deterministic synthetic parameters (shapes per nn.Embedding / nn.Linear).
    emb_table = jax.random.normal(k_emb, (VOCAB, EMBED_DIM), dtype=jnp.float32)
    lin_weight = jax.random.normal(k_w, (VOCAB, EMBED_DIM), dtype=jnp.float32) * 0.05
    lin_bias = jax.random.normal(k_b, (VOCAB,), dtype=jnp.float32) * 0.01

    inputs = jax.random.randint(k_idx, (BATCH, SEQ), 0, VOCAB, dtype=jnp.int32)

    # One-time parameter preparation (bf16 operands, pre-transposed weight).
    emb_bf, w_t_bf, bias_f32 = prepare_word2vec_params(emb_table, lin_weight, lin_bias)

    out = word2vec_forward(inputs, emb_bf, w_t_bf, bias_f32)
    out = jax.block_until_ready(out)
    assert out.shape == (BATCH, SEQ, VOCAB)
    assert out.dtype == jnp.float32

    # Check vs. a reference using the same bf16 operand cast (f32 accumulate).
    emb_cast = emb_table.astype(jnp.bfloat16).astype(jnp.float32)
    w_cast = lin_weight.astype(jnp.bfloat16).astype(jnp.float32)
    ref_cast = emb_cast[inputs] @ w_cast.T + lin_bias
    assert jnp.allclose(out, ref_cast, atol=1e-2, rtol=1e-2)

    # Loose check vs. the pure-f32 PyTorch-semantics reference.
    ref_f32 = emb_table[inputs] @ lin_weight.T + lin_bias
    assert jnp.allclose(out, ref_f32, atol=5e-2, rtol=5e-2)

    print("KERNEL_OK")
</pallas_src>

<mosaic_0001>
module attributes {stable_mosaic.version = 11 : i64} {
  func.func @_w2v_kernel(%arg0: i32, %arg1: i32, %arg2: memref<16x128xbf16, #tpu.memory_space<vmem>>, %arg3: memref<128x256xbf16, #tpu.memory_space<vmem>>, %arg4: memref<1x256xf32, #tpu.memory_space<vmem>>, %arg5: memref<16x256xf32, #tpu.memory_space<vmem>>) attributes {dimension_semantics = [#tpu.dimension_semantics<parallel>, #tpu.dimension_semantics<parallel>], iteration_bounds = array<i64: 1, 1>, scalar_prefetch = 0 : i64, scratch_operands = 0 : i64, tpu.core_type = #tpu.core_type<tc>, window_params = [{transform_indices = @transform_0, window_bounds = array<i64: 16, 128>}, {transform_indices = @transform_1, window_bounds = array<i64: 128, 256>}, {transform_indices = @transform_2, window_bounds = array<i64: 1, 256>}, {transform_indices = @transform_3, window_bounds = array<i64: 16, 256>}]} {
    %c0 = arith.constant 0 : index
    %c0_0 = arith.constant 0 : index
    %0 = vector.load %arg2[%c0, %c0_0] : memref<16x128xbf16, #tpu.memory_space<vmem>>, vector<16x128xbf16>
    %c0_1 = arith.constant 0 : index
    %c0_2 = arith.constant 0 : index
    %1 = vector.load %arg3[%c0_1, %c0_2] : memref<128x256xbf16, #tpu.memory_space<vmem>>, vector<128x256xbf16>
    %cst = arith.constant dense<0.000000e+00> : vector<16x256xf32>
    %2 = tpu.matmul %0, %1, %cst {dimension_numbers = #tpu.dot_dimension_numbers<[1], [0], [0], [1], [0, 0, 1, 1], [], []>} : vector<16x128xbf16>, vector<128x256xbf16>, vector<16x256xf32> -> vector<16x256xf32>
    %c0_3 = arith.constant 0 : index
    %c0_4 = arith.constant 0 : index
    %3 = vector.load %arg4[%c0_3, %c0_4] : memref<1x256xf32, #tpu.memory_space<vmem>>, vector<1x256xf32>
    %4 = vector.broadcast %3 : vector<1x256xf32> to vector<16x256xf32>
    %5 = arith.addf %2, %4 : vector<16x256xf32>
    %c0_5 = arith.constant 0 : index
    %c0_6 = arith.constant 0 : index
    %6 = vector.load %arg5[%c0_5, %c0_6] : memref<16x256xf32, #tpu.memory_space<vmem>>, vector<16x256xf32>
    tpu.vector_store %arg5[%c0_5, %c0_6], %5 {strides = array<i32>} : memref<16x256xf32, #tpu.memory_space<vmem>>, vector<16x256xf32>,
    return
  }
  func.func @transform_0(%arg0: i32, %arg1: i32) -> (i32, i32) {
    %c0_i32 = arith.constant 0 : i32
    %c0_i32_0 = arith.constant 0 : i32
    return %arg1, %c0_i32 : i32, i32
  }
  func.func @transform_1(%arg0: i32, %arg1: i32) -> (i32, i32) {
    %c0_i32 = arith.constant 0 : i32
    %c0_i32_0 = arith.constant 0 : i32
    return %c0_i32, %arg0 : i32, i32
  }
  func.func @transform_2(%arg0: i32, %arg1: i32) -> (i32, i32) {
    %c0_i32 = arith.constant 0 : i32
    %c0_i32_0 = arith.constant 0 : i32
    return %c0_i32, %arg0 : i32, i32
  }
  func.func @transform_3(%arg0: i32, %arg1: i32) -> (i32, i32) {
    %c0_i32 = arith.constant 0 : i32
    return %arg1, %arg0 : i32, i32
  }
}

</mosaic_0001>

<llo_original>
// kernel: word2vec_forward.1
$region0: #{word2vec_forward.1}
  #allocation0 [shape = 'u32[]', space=smem, size = 0x4, offset = 0x4, fixed_abs, tag = 'smem constant byte address 0x4 - core index']
  #allocation1 [shape = 'u32[144,128]{1,0:T(1,128)}', space=vmem, size = 0x12000, scoped, tag = 'internal scratch']
  %s0 = inlined_call_operand.vmem [shape: bf16[16,128], index: 0, kind: input, shape index: {}]
  %s1 = inlined_call_operand.hbm [shape: bf16[128,256], index: 1, kind: input, shape index: {}]
  %s2 = inlined_call_operand.vmem [shape: f32[1,256], index: 2, kind: input, shape index: {}]
  %s3 = inlined_call_operand.hbm [shape: f32[16,256], index: 3, kind: output, shape index: {}]
  %s4 = sld [smem:[#allocation0]]
  $region26: #{word2vec_forward.1} parent=0
    _
  %s6 = ssub.s32 1, %s4
  %s7 = scalar_select 0, %s6, %s4
  $region1: #{word2vec_forward.1} parent=0
    #allocation2 [shape = 'u8[65536]{0}', space=vmem, size = 0x10000, scoped, tag = 'input window, operand 1, single buffered']
    #allocation3 [shape = 's32[1]{0}', space=sflag, size = 0x4, scoped, tag = 'scoped memory for word2vec_forward.1']
    #allocation4 [shape = 's32[1]{0}', space=sflag, size = 0x4, scoped, tag = 'scoped memory for word2vec_forward.1']
    #allocation5 [shape = 'u8[16384]{0}', space=vmem, size = 0x4000, scoped, tag = 'output window, operand 0, single buffered']
    %8 = vsyncpa [#allocation3], 0
    %9 = vsyncpa [#allocation4], 0
    // Predicated region
    $region2: #{word2vec_forward.1} parent=1 // pred_check
      _
    $region3: #{word2vec_forward.1} parent=1 // pred_check_branch
      %11 = sbr.rel (0) target = $region5
    $region4: #{word2vec_forward.1} parent=1 // pred_region
      _
    $region5: #{word2vec_forward.1} parent=1 // pred_fallthru
      _
    // Predicated region
    $region6: #{word2vec_forward.1} parent=1 // pred_check
      _
    $region7: #{word2vec_forward.1} parent=1 // pred_check_branch
      %13 = sbr.rel (0) target = $region9
    $region8: #{word2vec_forward.1} parent=1 // pred_region
      %s15 = ssub.s32 2048, 2048
      %16 = vsyncadd [#allocation3], %s15
      %s17 = sshll.u32 [#allocation2], 4
      %s18 = int_to_ptr.vmem [resolvable:$true] %s17
      %23 = dma.hbm_to_vmem [thread:$0]  %s1, 2048, %s18, [#allocation3], 128, 128, 8
    $region9: #{word2vec_forward.1} parent=1 // pred_fallthru
      _
    // Predicated region
    $region10: #{word2vec_forward.1} parent=1 // pred_check
      _
    $region11: #{word2vec_forward.1} parent=1 // pred_check_branch
      %25 = sbr.rel (0) target = $region13
    $region12: #{word2vec_forward.1} parent=1 // pred_region
      _
    $region13: #{word2vec_forward.1} parent=1 // pred_fallthru
      _
    // Predicated region
    $region14: #{word2vec_forward.1} parent=1 // pred_check
      _
    $region15: #{word2vec_forward.1} parent=1 // pred_check_branch
      %27 = sbr.rel (0) target = $region17
    $region16: #{word2vec_forward.1} parent=1 // pred_region
      %28 = dma.done [#allocation3], 2048
    $region17: #{word2vec_forward.1} parent=1 // pred_fallthru
      _
    %v30 = vld [vmem:[%s0] sm:$0xf]
    %v31 = vld [vmem:[%s0 + $0x4] sm:$0xf]
    %v32 = vld [vmem:[#allocation2] sm:$0xff]
    %v33 = vld [vmem:[#allocation2 + $0x8] sm:$0xff]
    %v34 = vld [vmem:[#allocation2 + $0x10] sm:$0xff]
    %v35 = vld [vmem:[#allocation2 + $0x18] sm:$0xff]
    %v36 = vld [vmem:[#allocation2 + $0x20] sm:$0xff]
    %v37 = vld [vmem:[#allocation2 + $0x28] sm:$0xff]
    %v38 = vld [vmem:[#allocation2 + $0x30] sm:$0xff]
    %v39 = vld [vmem:[#allocation2 + $0x38] sm:$0xff]
    %v40 = vld [vmem:[#allocation2 + $0x40] sm:$0xff]
    %v41 = vld [vmem:[#allocation2 + $0x48] sm:$0xff]
    %v42 = vld [vmem:[#allocation2 + $0x50] sm:$0xff]
    %v43 = vld [vmem:[#allocation2 + $0x58] sm:$0xff]
    %v44 = vld [vmem:[#allocation2 + $0x60] sm:$0xff]
    %v45 = vld [vmem:[#allocation2 + $0x68] sm:$0xff]
    %v46 = vld [vmem:[#allocation2 + $0x70] sm:$0xff]
    %v47 = vld [vmem:[#allocation2 + $0x78] sm:$0xff]
    %v48 = vld [vmem:[%s2] sm:$0x3]
    %v50 = vlaneseq
    %v51 = vshrl.u32 %v50, 7
    %v52 = vsub.s32 0, %v51
    %v53 = vrot.slane %v48, %v52
    %v54 = vlaneseq
    %v55 = vshrl.u32 %v54, 7
    %v56 = vsub.s32 1, %v55
    %v57 = vrot.slane %v48, %v56
    %v62 = vunpack.c.l.b16 %v30
    %v63 = vunpack.c.l.b16 %v31
    %v64 = vpack.c.b16 %v63, %v62
    %v82 = vunpack.c.l.b16 %v32
    %v83 = vunpack.c.h.b16 %v32
    %v84 = vunpack.c.l.b16 %v33
    %v85 = vunpack.c.h.b16 %v33
    %v86 = vunpack.c.l.b16 %v34
    %v87 = vunpack.c.h.b16 %v34
    %v88 = vunpack.c.l.b16 %v35
    %v89 = vunpack.c.h.b16 %v35
    %v90 = vunpack.c.l.b16 %v36
    %v91 = vunpack.c.h.b16 %v36
    %v92 = vunpack.c.l.b16 %v37
    %v93 = vunpack.c.h.b16 %v37
    %v94 = vunpack.c.l.b16 %v38
    %v95 = vunpack.c.h.b16 %v38
    %v96 = vunpack.c.l.b16 %v39
    %v97 = vunpack.c.h.b16 %v39
    %v98 = vunpack.c.l.b16 %v40
    %v99 = vunpack.c.h.b16 %v40
    %v100 = vunpack.c.l.b16 %v41
    %v101 = vunpack.c.h.b16 %v41
    %v102 = vunpack.c.l.b16 %v42
    %v103 = vunpack.c.h.b16 %v42
    %v104 = vunpack.c.l.b16 %v43
    %v105 = vunpack.c.h.b16 %v43
    %v106 = vunpack.c.l.b16 %v44
    %v107 = vunpack.c.h.b16 %v44
    %v108 = vunpack.c.l.b16 %v45
    %v109 = vunpack.c.h.b16 %v45
    %v110 = vunpack.c.l.b16 %v46
    %v111 = vunpack.c.h.b16 %v46
    %v112 = vunpack.c.l.b16 %v47
    %v113 = vunpack.c.h.b16 %v47
    %v114 = vpack.c.b16 %v84, %v82
    %v115 = vpack.c.b16 %v85, %v83
    %v116 = vpack.c.b16 %v88, %v86
    %v117 = vpack.c.b16 %v89, %v87
    %v118 = vpack.c.b16 %v92, %v90
    %v119 = vpack.c.b16 %v93, %v91
    %v120 = vpack.c.b16 %v96, %v94
    %v121 = vpack.c.b16 %v97, %v95
    %v122 = vpack.c.b16 %v100, %v98
    %v123 = vpack.c.b16 %v101, %v99
    %v124 = vpack.c.b16 %v104, %v102
    %v125 = vpack.c.b16 %v105, %v103
    %v126 = vpack.c.b16 %v108, %v106
    %v127 = vpack.c.b16 %v109, %v107
    %v128 = vpack.c.b16 %v112, %v110
    %v129 = vpack.c.b16 %v113, %v111
    %146 = vmatprep.subr.bf16.mxu0 %v115
    %147 = vmatpush1.bf16.msra.mxu0 %v114
    %148 = vmatprep.subr.bf16.mxu0 %v117
    %149 = vmatpush1.bf16.msra.mxu0 %v116
    %150 = vmatprep.subr.bf16.mxu0 %v119
    %151 = vmatpush1.bf16.msra.mxu0 %v118
    %152 = vmatprep.subr.bf16.mxu0 %v121
    %153 = vmatpush1.bf16.msra.mxu0 %v120
    %154 = vmatprep.subr.bf16.mxu0 %v123
    %155 = vmatpush1.bf16.msra.mxu0 %v122
    %156 = vmatprep.subr.bf16.mxu0 %v125
    %157 = vmatpush1.bf16.msra.mxu0 %v124
    %158 = vmatprep.subr.bf16.mxu0 %v127
    %159 = vmatpush1.bf16.msra.mxu0 %v126
    %160 = vmatprep.subr.bf16.mxu0 %v129
    %161 = vmatpush1.bf16.msra.mxu0 %v128
    %162 = vmatprep.subr.bf16.mxu0 0
    %163 = vmatpush1.bf16.msra.mxu0 0
    %164 = vmatprep.subr.bf16.mxu0 0
    %165 = vmatpush1.bf16.msra.mxu0 0
    %166 = vmatprep.subr.bf16.mxu0 0
    %167 = vmatpush1.bf16.msra.mxu0 0
    %168 = vmatprep.subr.bf16.mxu0 0
    %169 = vmatpush1.bf16.msra.mxu0 0
    %170 = vmatprep.subr.bf16.mxu0 0
    %171 = vmatpush1.bf16.msra.mxu0 0
    %172 = vmatprep.subr.bf16.mxu0 0
    %173 = vmatpush1.bf16.msra.mxu0 0
    %174 = vmatprep.subr.bf16.mxu0 0
    %175 = vmatpush1.bf16.msra.mxu0 0
    %176 = vmatprep.subr.bf16.mxu0 0
    %177 = vmatpush1.bf16.msra.mxu0 0
    %178 = vmatprep.mubr.bf16.mxu0 0
    %179 = vmatmul.mubr.bf16.gmra.mrb[0].mxu0 %v64
    %v180 = vpop.f32.mrb[0].mxu0
    %v181 = vadd.f32 %v53, %v180
    %v182 = vpop.f32.mrb[0].mxu0
    %v183 = vadd.f32 %v57, %v182
    %v184 = vpop.f32.mrb[0].mxu0
    %v185 = vadd.f32 %v53, %v184
    %v186 = vpop.f32.mrb[0].mxu0
    %v187 = vadd.f32 %v57, %v186
    %188 = vdwg.mxu0
    %189 = vst [vmem:[#allocation5] sm:$0xff] %v181
    %190 = vst [vmem:[#allocation5 + $0x8] sm:$0xff] %v183
    %191 = vst [vmem:[#allocation5 + $0x10] sm:$0xff] %v185
    %192 = vst [vmem:[#allocation5 + $0x18] sm:$0xff] %v187
    // Predicated region
    $region18: #{word2vec_forward.1} parent=1 // pred_check
      _
    $region19: #{word2vec_forward.1} parent=1 // pred_check_branch
      %194 = sbr.rel (0) target = $region21
    $region20: #{word2vec_forward.1} parent=1 // pred_region
      %s196 = ssub.s32 512, 512
      %197 = vsyncadd [#allocation4], %s196
      %s198 = sshll.u32 [#allocation5], 4
      %s199 = int_to_ptr.vmem [resolvable:$true] %s198
      %204 = dma.vmem_to_hbm [thread:$0]  %s199, 512, %s3, [#allocation4], 256, 256, 16
    $region21: #{word2vec_forward.1} parent=1 // pred_fallthru
      _
    // Predicated region
    $region22: #{word2vec_forward.1} parent=1 // pred_check
      _
    $region23: #{word2vec_forward.1} parent=1 // pred_check_branch
      %206 = sbr.rel (0) target = $region25
    $region24: #{word2vec_forward.1} parent=1 // pred_region
      %207 = dma.done [#allocation4], 512
    $region25: #{word2vec_forward.1} parent=1 // pred_fallthru
      _
    %208 = vsyncpa [#allocation3], 1
    %209 = vsyncpa [#allocation4], 1

</llo_original>
